<compile_context>
chip_gen: v5e
topology: v5e:2x2
jax: 0.10.0
libtpu: 0.0.40
codegen_flags: <defaults>
</compile_context>

<pallas_src>
import functools

import jax
import jax.numpy as jnp
from jax import lax
from jax.experimental import pallas as pl
from jax.experimental.pallas import tpu as pltpu

_LANES = 128


def _round_up(x, m):
    return (x + m - 1) // m * m


def _cdiv(a, b):
    return (a + b - 1) // b


# --------------------------------------------------------------------------- #
# Kernels
# --------------------------------------------------------------------------- #
def _per_sample_loss(logits_ref, targets_ref, n_classes):
    """Per-sample CE with background remapping on one block.

    logits_ref : (C, TR, 128) native dtype -- class-major, batch on (sublane, lane)
    targets_ref: (TR, 128)    int32
    returns    : (TR, 128)    float32 per-sample loss
    """
    t = targets_ref[...]
    t = jnp.where(t < 0, n_classes, t)            # remap unknown (<0) -> class N
    n_out = logits_ref.shape[0]                   # = n_classes + 1, compile-time

    # Unrolled over the small static class dim: every live value stays a single
    # (TR, 128) slab (no (C, TR, 128) f32 temporaries, no dynamic gather).
    m = logits_ref[0].astype(jnp.float32)
    for c in range(1, n_out):
        m = jnp.maximum(m, logits_ref[c].astype(jnp.float32))
    s = jnp.zeros_like(m)
    picked = jnp.zeros_like(m)
    for c in range(n_out):
        row = logits_ref[c].astype(jnp.float32)
        s = s + jnp.exp(row - m)                  # stable log-sum-exp accumulation
        picked = picked + jnp.where(t == c, row, 0.0)
    return (m + jnp.log(s)) - picked              # (TR, 128)


def _bg_ce_none_kernel(logits_ref, targets_ref, loss_ref, *, n_classes):
    loss_ref[...] = _per_sample_loss(logits_ref, targets_ref, n_classes)


def _bg_ce_sum_kernel(logits_ref, targets_ref, psum_ref, *, n_classes, batch):
    loss = _per_sample_loss(logits_ref, targets_ref, n_classes)      # (TR, 128)
    tr, lanes = loss.shape
    # Mask the batch padding and the (possibly garbage) rows of a ragged final
    # block before reducing.
    row = lax.broadcasted_iota(jnp.int32, (tr, lanes), 0)
    col = lax.broadcasted_iota(jnp.int32, (tr, lanes), 1)
    gidx = (pl.program_id(0) * tr + row) * lanes + col
    partial = jnp.sum(jnp.where(gidx < batch, loss, 0.0))
    # Each tile owns its private (8, 128) output slot -> "parallel"-safe.
    psum_ref[...] = jnp.broadcast_to(partial, psum_ref.shape)


# --------------------------------------------------------------------------- #
# Wrapper
# --------------------------------------------------------------------------- #
def _choose_tile_rows(n_rows, block_rows, n_out, itemsize):
    """Pick rows-of-128-samples per tile from the PADDED VMEM footprint."""
    sub = 8 if itemsize >= 4 else 16              # sublane tile (f32: 8, bf16/f16: 16)
    # Per row-of-128-samples: 2 logits buffers + 2 target buffers + 2 output
    # buffers + a generous budget (~12 slabs) for in-kernel f32 intermediates.
    bytes_per_row = _LANES * (2 * n_out * itemsize + 2 * 4 + 2 * 4 + 12 * 4)
    cap = max(sub, ((40 * 2**20) // bytes_per_row) // sub * sub)
    tr = max(sub, (min(block_rows // _LANES, cap) // sub) * sub)
    if n_rows <= tr:
        if n_rows >= 2 * sub:
            # Split into >=2 tiles so both v7x TensorCores get work.
            tr = _round_up(_cdiv(n_rows, 2), sub)
        else:
            tr = n_rows                            # single full-extent block
    return tr, bytes_per_row


@functools.partial(jax.jit, static_argnums=(2, 3, 4))
def _background_class_loss_impl(logits, targets, n_classes, reduction, block_rows):
    B, n_out = logits.shape
    itemsize = jnp.dtype(logits.dtype).itemsize

    # Class-major, lane-dense layout: (B, C) -> (C, R, 128).  Under jit the pad /
    # transpose / reshape fuse into the single relayout copy the class-major
    # input requires (no extra HBM round trip for the pad).
    b_pad = _round_up(B, _LANES)
    n_rows = b_pad // _LANES
    lg = jnp.pad(logits, ((0, b_pad - B), (0, 0))).T.reshape(n_out, n_rows, _LANES)
    tg = jnp.pad(targets.astype(jnp.int32), (0, b_pad - B)).reshape(n_rows, _LANES)

    tr, bytes_per_row = _choose_tile_rows(n_rows, block_rows, n_out, itemsize)
    num_tiles = _cdiv(n_rows, tr)

    vmem_limit = int(min(48 * 2**20,                       # v7x headroom cap
                         max(16 * 2**20, tr * bytes_per_row + 4 * 2**20)))
    cost = pl.CostEstimate(
        flops=6 * b_pad * n_out,
        transcendentals=b_pad * (n_out + 1),
        bytes_accessed=b_pad * n_out * itemsize + 2 * b_pad * 4,
    )
    compiler_params = pltpu.CompilerParams(
        dimension_semantics=("parallel",),        # independent tiles -> megacore
        vmem_limit_bytes=vmem_limit,
    )
    in_specs = [
        pl.BlockSpec((n_out, tr, _LANES), lambda i: (0, i, 0)),   # logits block
        pl.BlockSpec((tr, _LANES), lambda i: (i, 0)),             # targets block
    ]

    if reduction == "none":
        out = pl.pallas_call(
            functools.partial(_bg_ce_none_kernel, n_classes=n_classes),
            out_shape=jax.ShapeDtypeStruct((n_rows, _LANES), jnp.float32),
            grid=(num_tiles,),
            in_specs=in_specs,
            out_specs=pl.BlockSpec((tr, _LANES), lambda i: (i, 0)),
            compiler_params=compiler_params,
            cost_estimate=cost,
        )(lg, tg)
        return out.reshape(-1)[:B]                # row-major flatten == sample order

    # mean / sum: per-tile partial sums only; finish the tiny reduce in XLA.
    partials = pl.pallas_call(
        functools.partial(_bg_ce_sum_kernel, n_classes=n_classes, batch=B),
        out_shape=jax.ShapeDtypeStruct((8, num_tiles * _LANES), jnp.float32),
        grid=(num_tiles,),
        in_specs=in_specs,
        out_specs=pl.BlockSpec((8, _LANES), lambda i: (0, i)),
        compiler_params=compiler_params,
        cost_estimate=cost,
    )(lg, tg)
    total = jnp.sum(partials[0, ::_LANES])        # one lane per tile
    if reduction == "sum":
        return total
    return total / jnp.float32(B)                 # mean over the TRUE batch size


def background_class_loss(logits, targets, n_classes, reduction="mean",
                          *, block_rows=65536, validate=False):
    """JAX/Pallas equivalent of BackgroundClassLoss(n_classes, reduction)(logits, targets)."""
    if reduction not in ("mean", "sum", "none"):
        raise ValueError(f"Unknown reduction: {reduction}")
    if validate:
        # TODO(synk): the PyTorch module's data-dependent ValueError cannot raise
        # from inside a jitted/TPU kernel; this eager check host-syncs.
        if bool(jnp.any(targets >= n_classes)):
            raise ValueError(f"Target label too large: {int(jnp.max(targets))}")
    assert logits.shape[-1] == n_classes + 1, "logits must have N+1 columns (background)"
    return _background_class_loss_impl(logits, targets, n_classes, reduction,
                                       int(block_rows))


# --------------------------------------------------------------------------- #
# Reference + demo
# --------------------------------------------------------------------------- #
def _reference_loss(logits, targets, n_classes, reduction="mean"):
    """Pure-JAX reference for verification."""
    t = jnp.where(targets < 0, n_classes, targets).astype(jnp.int32)
    logp = jax.nn.log_softmax(logits.astype(jnp.float32), axis=-1)
    per_sample = -jnp.take_along_axis(logp, t[:, None], axis=-1)[:, 0]
    if reduction == "mean":
        return jnp.mean(per_sample)
    if reduction == "sum":
        return jnp.sum(per_sample)
    return per_sample


if __name__ == "__main__":
    key = jax.random.PRNGKey(0)

    N_CLASSES = 4          # N (not counting background)
    B = 8                  # batch
    C = N_CLASSES + 1      # logits width = N + 1

    k1, k2, k3 = jax.random.split(key, 3)
    logits = jax.random.normal(k1, (B, C), dtype=jnp.float32)
    # Mix of in-distribution labels [0, N) and unknown (negative) labels.
    targets = jnp.array([0, 1, 2, 3, -1, 2, -1, 0], dtype=jnp.int32)

    for reduction in ("mean", "sum", "none"):
        out = jax.block_until_ready(
            background_class_loss(logits, targets, N_CLASSES, reduction=reduction))
        ref = _reference_loss(logits, targets, N_CLASSES, reduction=reduction)
        assert jnp.allclose(out, ref, atol=1e-5, rtol=1e-5), (reduction, out, ref)

    # bf16 logits travel to the kernel at native width (no wrapper upcast).
    logits_bf16 = logits.astype(jnp.bfloat16)
    out_bf = jax.block_until_ready(
        background_class_loss(logits_bf16, targets, N_CLASSES, reduction="mean"))
    ref_bf = _reference_loss(logits_bf16, targets, N_CLASSES, reduction="mean")
    assert jnp.allclose(out_bf, ref_bf, atol=1e-4, rtol=1e-4), (out_bf, ref_bf)

    # Gridded, pipelined path: >=2 tiles (v7x megacore), ragged final block and
    # batch padding exercised (2500 = 19*128 + 68, tiles of 8 rows -> 3 tiles).
    B2 = 2500
    logits2 = jax.random.normal(k2, (B2, C), dtype=jnp.float32)
    targets2 = jax.random.randint(k3, (B2,), -1, N_CLASSES)
    for reduction in ("mean", "sum", "none"):
        out2 = jax.block_until_ready(
            background_class_loss(logits2, targets2, N_CLASSES, reduction=reduction,
                                  block_rows=1024))
        ref2 = _reference_loss(logits2, targets2, N_CLASSES, reduction=reduction)
        assert jnp.allclose(out2, ref2, atol=1e-5, rtol=1e-5), (reduction,)

    print("KERNEL_OK")
</pallas_src>

<mosaic_0001>
module attributes {stable_mosaic.version = 11 : i64} {
  func.func @_bg_ce_sum_kernel(%arg0: i32, %arg1: memref<5x1x128xf32, #tpu.memory_space<vmem>>, %arg2: memref<1x128xi32, #tpu.memory_space<vmem>>, %arg3: memref<8x128xf32, #tpu.memory_space<vmem>>) attributes {dimension_semantics = [#tpu.dimension_semantics<parallel>], iteration_bounds = array<i64: 1>, scalar_prefetch = 0 : i64, scratch_operands = 0 : i64, tpu.core_type = #tpu.core_type<tc>, window_params = [{transform_indices = @transform_0, window_bounds = array<i64: 5, 1, 128>}, {transform_indices = @transform_1, window_bounds = array<i64: 1, 128>}, {transform_indices = @transform_2, window_bounds = array<i64: 8, 128>}]} {
    %c0 = arith.constant 0 : index
    %c0_0 = arith.constant 0 : index
    %0 = vector.load %arg2[%c0, %c0_0] : memref<1x128xi32, #tpu.memory_space<vmem>>, vector<1x128xi32>
    %c0_i32 = arith.constant 0 : i32
    %1 = vector.broadcast %c0_i32 : i32 to vector<1x128xi32>
    %2 = arith.cmpi slt, %0, %1 : vector<1x128xi32>
    %c4_i32 = arith.constant 4 : i32
    %3 = vector.broadcast %c4_i32 : i32 to vector<1x128xi32>
    %4 = arith.select %2, %3, %0 : vector<1x128xi1>, vector<1x128xi32>
    %c0_1 = arith.constant 0 : index
    %c0_2 = arith.constant 0 : index
    %c0_3 = arith.constant 0 : index
    %5 = vector.load %arg1[%c0_1, %c0_2, %c0_3] : memref<5x1x128xf32, #tpu.memory_space<vmem>>, vector<1x1x128xf32>
    %6 = vector.shape_cast %5 : vector<1x1x128xf32> to vector<1x128xf32>
    %c1 = arith.constant 1 : index
    %c0_4 = arith.constant 0 : index
    %c0_5 = arith.constant 0 : index
    %7 = vector.load %arg1[%c1, %c0_4, %c0_5] : memref<5x1x128xf32, #tpu.memory_space<vmem>>, vector<1x1x128xf32>
    %8 = vector.shape_cast %7 : vector<1x1x128xf32> to vector<1x128xf32>
    %9 = arith.maximumf %6, %8 : vector<1x128xf32>
    %c2 = arith.constant 2 : index
    %c0_6 = arith.constant 0 : index
    %c0_7 = arith.constant 0 : index
    %10 = vector.load %arg1[%c2, %c0_6, %c0_7] : memref<5x1x128xf32, #tpu.memory_space<vmem>>, vector<1x1x128xf32>
    %11 = vector.shape_cast %10 : vector<1x1x128xf32> to vector<1x128xf32>
    %12 = arith.maximumf %9, %11 : vector<1x128xf32>
    %c3 = arith.constant 3 : index
    %c0_8 = arith.constant 0 : index
    %c0_9 = arith.constant 0 : index
    %13 = vector.load %arg1[%c3, %c0_8, %c0_9] : memref<5x1x128xf32, #tpu.memory_space<vmem>>, vector<1x1x128xf32>
    %14 = vector.shape_cast %13 : vector<1x1x128xf32> to vector<1x128xf32>
    %15 = arith.maximumf %12, %14 : vector<1x128xf32>
    %c4 = arith.constant 4 : index
    %c0_10 = arith.constant 0 : index
    %c0_11 = arith.constant 0 : index
    %16 = vector.load %arg1[%c4, %c0_10, %c0_11] : memref<5x1x128xf32, #tpu.memory_space<vmem>>, vector<1x1x128xf32>
    %17 = vector.shape_cast %16 : vector<1x1x128xf32> to vector<1x128xf32>
    %18 = arith.maximumf %15, %17 : vector<1x128xf32>
    %cst = arith.constant 0.000000e+00 : f32
    %19 = vector.broadcast %cst : f32 to vector<1x128xf32>
    %cst_12 = arith.constant 0.000000e+00 : f32
    %20 = vector.broadcast %cst_12 : f32 to vector<1x128xf32>
    %c0_13 = arith.constant 0 : index
    %c0_14 = arith.constant 0 : index
    %c0_15 = arith.constant 0 : index
    %21 = vector.load %arg1[%c0_13, %c0_14, %c0_15] : memref<5x1x128xf32, #tpu.memory_space<vmem>>, vector<1x1x128xf32>
    %22 = vector.shape_cast %21 : vector<1x1x128xf32> to vector<1x128xf32>
    %23 = arith.subf %22, %18 : vector<1x128xf32>
    %24 = math.exp %23 : vector<1x128xf32>
    %25 = arith.addf %19, %24 : vector<1x128xf32>
    %c0_i32_16 = arith.constant 0 : i32
    %26 = vector.broadcast %c0_i32_16 : i32 to vector<1x128xi32>
    %27 = arith.cmpi eq, %4, %26 : vector<1x128xi32>
    %cst_17 = arith.constant 0.000000e+00 : f32
    %28 = vector.broadcast %cst_17 : f32 to vector<1x128xf32>
    %29 = arith.select %27, %22, %28 : vector<1x128xi1>, vector<1x128xf32>
    %30 = arith.addf %20, %29 : vector<1x128xf32>
    %c1_18 = arith.constant 1 : index
    %c0_19 = arith.constant 0 : index
    %c0_20 = arith.constant 0 : index
    %31 = vector.load %arg1[%c1_18, %c0_19, %c0_20] : memref<5x1x128xf32, #tpu.memory_space<vmem>>, vector<1x1x128xf32>
    %32 = vector.shape_cast %31 : vector<1x1x128xf32> to vector<1x128xf32>
    %33 = arith.subf %32, %18 : vector<1x128xf32>
    %34 = math.exp %33 : vector<1x128xf32>
    %35 = arith.addf %25, %34 : vector<1x128xf32>
    %c1_i32 = arith.constant 1 : i32
    %36 = vector.broadcast %c1_i32 : i32 to vector<1x128xi32>
    %37 = arith.cmpi eq, %4, %36 : vector<1x128xi32>
    %cst_21 = arith.constant 0.000000e+00 : f32
    %38 = vector.broadcast %cst_21 : f32 to vector<1x128xf32>
    %39 = arith.select %37, %32, %38 : vector<1x128xi1>, vector<1x128xf32>
    %40 = arith.addf %30, %39 : vector<1x128xf32>
    %c2_22 = arith.constant 2 : index
    %c0_23 = arith.constant 0 : index
    %c0_24 = arith.constant 0 : index
    %41 = vector.load %arg1[%c2_22, %c0_23, %c0_24] : memref<5x1x128xf32, #tpu.memory_space<vmem>>, vector<1x1x128xf32>
    %42 = vector.shape_cast %41 : vector<1x1x128xf32> to vector<1x128xf32>
    %43 = arith.subf %42, %18 : vector<1x128xf32>
    %44 = math.exp %43 : vector<1x128xf32>
    %45 = arith.addf %35, %44 : vector<1x128xf32>
    %c2_i32 = arith.constant 2 : i32
    %46 = vector.broadcast %c2_i32 : i32 to vector<1x128xi32>
    %47 = arith.cmpi eq, %4, %46 : vector<1x128xi32>
    %cst_25 = arith.constant 0.000000e+00 : f32
    %48 = vector.broadcast %cst_25 : f32 to vector<1x128xf32>
    %49 = arith.select %47, %42, %48 : vector<1x128xi1>, vector<1x128xf32>
    %50 = arith.addf %40, %49 : vector<1x128xf32>
    %c3_26 = arith.constant 3 : index
    %c0_27 = arith.constant 0 : index
    %c0_28 = arith.constant 0 : index
    %51 = vector.load %arg1[%c3_26, %c0_27, %c0_28] : memref<5x1x128xf32, #tpu.memory_space<vmem>>, vector<1x1x128xf32>
    %52 = vector.shape_cast %51 : vector<1x1x128xf32> to vector<1x128xf32>
    %53 = arith.subf %52, %18 : vector<1x128xf32>
    %54 = math.exp %53 : vector<1x128xf32>
    %55 = arith.addf %45, %54 : vector<1x128xf32>
    %c3_i32 = arith.constant 3 : i32
    %56 = vector.broadcast %c3_i32 : i32 to vector<1x128xi32>
    %57 = arith.cmpi eq, %4, %56 : vector<1x128xi32>
    %cst_29 = arith.constant 0.000000e+00 : f32
    %58 = vector.broadcast %cst_29 : f32 to vector<1x128xf32>
    %59 = arith.select %57, %52, %58 : vector<1x128xi1>, vector<1x128xf32>
    %60 = arith.addf %50, %59 : vector<1x128xf32>
    %c4_30 = arith.constant 4 : index
    %c0_31 = arith.constant 0 : index
    %c0_32 = arith.constant 0 : index
    %61 = vector.load %arg1[%c4_30, %c0_31, %c0_32] : memref<5x1x128xf32, #tpu.memory_space<vmem>>, vector<1x1x128xf32>
    %62 = vector.shape_cast %61 : vector<1x1x128xf32> to vector<1x128xf32>
    %63 = arith.subf %62, %18 : vector<1x128xf32>
    %64 = math.exp %63 : vector<1x128xf32>
    %65 = arith.addf %55, %64 : vector<1x128xf32>
    %c4_i32_33 = arith.constant 4 : i32
    %66 = vector.broadcast %c4_i32_33 : i32 to vector<1x128xi32>
    %67 = arith.cmpi eq, %4, %66 : vector<1x128xi32>
    %cst_34 = arith.constant 0.000000e+00 : f32
    %68 = vector.broadcast %cst_34 : f32 to vector<1x128xf32>
    %69 = arith.select %67, %62, %68 : vector<1x128xi1>, vector<1x128xf32>
    %70 = arith.addf %60, %69 : vector<1x128xf32>
    %71 = math.log %65 : vector<1x128xf32>
    %72 = arith.addf %18, %71 : vector<1x128xf32>
    %73 = arith.subf %72, %70 : vector<1x128xf32>
    %74 = tpu.iota {dimensions = array<i32: 0>} : vector<1x128xi32>
    %75 = tpu.iota {dimensions = array<i32: 1>} : vector<1x128xi32>
    %c1_i32_35 = arith.constant 1 : i32
    %76 = arith.muli %arg0, %c1_i32_35 : i32
    %77 = vector.broadcast %76 : i32 to vector<1x128xi32>
    %78 = arith.addi %77, %74 : vector<1x128xi32>
    %c128_i32 = arith.constant 128 : i32
    %79 = vector.broadcast %c128_i32 : i32 to vector<1x128xi32>
    %80 = arith.muli %78, %79 : vector<1x128xi32>
    %81 = arith.addi %80, %75 : vector<1x128xi32>
    %c8_i32 = arith.constant 8 : i32
    %82 = vector.broadcast %c8_i32 : i32 to vector<1x128xi32>
    %83 = arith.cmpi slt, %81, %82 : vector<1x128xi32>
    %cst_36 = arith.constant 0.000000e+00 : f32
    %84 = vector.broadcast %cst_36 : f32 to vector<1x128xf32>
    %85 = arith.select %83, %73, %84 : vector<1x128xi1>, vector<1x128xf32>
    %86 = vector.shape_cast %85 : vector<1x128xf32> to vector<1x1x128xf32>
    %cst_37 = arith.constant dense<0.000000e+00> : vector<1xf32>
    %87 = vector.multi_reduction <add>, %86, %cst_37 [1, 2] : vector<1x1x128xf32> to vector<1xf32>
    %88 = vector.shape_cast %87 : vector<1xf32> to vector<1x1x1xf32>
    %89 = vector.extract %88[0, 0, 0] : f32 from vector<1x1x1xf32>
    %90 = vector.broadcast %89 : f32 to vector<8x128xf32>
    %c0_38 = arith.constant 0 : index
    %c0_39 = arith.constant 0 : index
    %91 = vector.load %arg3[%c0_38, %c0_39] : memref<8x128xf32, #tpu.memory_space<vmem>>, vector<8x128xf32>
    tpu.vector_store %arg3[%c0_38, %c0_39], %90 {strides = array<i32>} : memref<8x128xf32, #tpu.memory_space<vmem>>, vector<8x128xf32>,
    return
  }
  func.func @transform_0(%arg0: i32) -> (i32, i32, i32) {
    %c0_i32 = arith.constant 0 : i32
    %c0_i32_0 = arith.constant 0 : i32
    %c0_i32_1 = arith.constant 0 : i32
    return %c0_i32, %arg0, %c0_i32_0 : i32, i32, i32
  }
  func.func @transform_1(%arg0: i32) -> (i32, i32) {
    %c0_i32 = arith.constant 0 : i32
    %c0_i32_0 = arith.constant 0 : i32
    return %arg0, %c0_i32 : i32, i32
  }
  func.func @transform_2(%arg0: i32) -> (i32, i32) {
    %c0_i32 = arith.constant 0 : i32
    %c0_i32_0 = arith.constant 0 : i32
    return %c0_i32, %arg0 : i32, i32
  }
}

</mosaic_0001>

<llo_original>
// kernel: _background_class_loss_impl.1
$region0: #{_background_class_loss_impl.1}
  #allocation0 [shape = 'u32[]', space=smem, size = 0x4, offset = 0x4, fixed_abs, tag = 'smem constant byte address 0x4 - core index']
  #allocation1 [shape = 'u32[72,128]{1,0:T(1,128)}', space=vmem, size = 0x9000, scoped, tag = 'internal scratch']
  %s0 = inlined_call_operand.vmem [shape: f32[5,1,128], index: 0, kind: input, shape index: {}]
  %s1 = inlined_call_operand.vmem [shape: s32[1,128], index: 1, kind: input, shape index: {}]
  %s2 = inlined_call_operand.vmem [shape: f32[8,128], index: 2, kind: output, shape index: {}]
  %s3 = sld [smem:[#allocation0]]
  $region18: #{_background_class_loss_impl.1} parent=0
    _
  %s5 = ssub.s32 1, %s3
  %s6 = scalar_select 0, %s5, %s3
  // Predicated region
  $region2: #{_background_class_loss_impl.1} parent=0 // pred_check
    _
  $region3: #{_background_class_loss_impl.1} parent=0 // pred_check_branch
    %8 = sbr.rel (0) target = $region5
  $region4: #{_background_class_loss_impl.1} parent=0 // pred_region
    _
  $region5: #{_background_class_loss_impl.1} parent=0 // pred_fallthru
    _
  // Predicated region
  $region6: #{_background_class_loss_impl.1} parent=0 // pred_check
    _
  $region7: #{_background_class_loss_impl.1} parent=0 // pred_check_branch
    %10 = sbr.rel (0) target = $region9
  $region8: #{_background_class_loss_impl.1} parent=0 // pred_region
    _
  $region9: #{_background_class_loss_impl.1} parent=0 // pred_fallthru
    _
  %v11 = vld [vmem:[%s1] sm:$0x1]
  %vm12 = vcmp.lt.s32.totalorder %v11, 0
  %v13 = vsel %vm12, 4, %v11
  %v14 = vld [vmem:[%s0] sm:$0x1]
  %s15 = scalar_lea.vmem %s0, 1
  %v16 = vld [vmem:[%s15] sm:$0x1]
  %v17 = vmax.f32 %v14, %v16
  %s18 = scalar_lea.vmem %s0, 2
  %v19 = vld [vmem:[%s18] sm:$0x1]
  %v20 = vmax.f32 %v17, %v19
  %s21 = scalar_lea.vmem %s0, 3
  %v22 = vld [vmem:[%s21] sm:$0x1]
  %v23 = vmax.f32 %v20, %v22
  %s24 = scalar_lea.vmem %s0, 4
  %v25 = vld [vmem:[%s24] sm:$0x1]
  %v26 = vmax.f32 %v23, %v25
  %v27 = vsub.f32 %v14, %v26
  %v28 = vmul.f32 %v27, 1.442695
  %v29 = vpow.pop %v28
  %v30 = vadd.f32 %v29, 0.0
  %vm31 = vcmp.eq.s32.totalorder %v13, 0
  %v32 = vsel %vm31, %v14, 0.0
  %v33 = vadd.f32 %v32, 0.0
  %v34 = vsub.f32 %v16, %v26
  %v35 = vmul.f32 %v34, 1.442695
  %v36 = vpow.pop %v35
  %v37 = vadd.f32 %v30, %v36
  %vm38 = vcmp.eq.s32.totalorder %v13, 1
  %v39 = vsel %vm38, %v16, 0.0
  %v40 = vadd.f32 %v33, %v39
  %v41 = vsub.f32 %v19, %v26
  %v42 = vmul.f32 %v41, 1.442695
  %v43 = vpow.pop %v42
  %v44 = vadd.f32 %v37, %v43
  %vm45 = vcmp.eq.s32.totalorder %v13, 2
  %v46 = vsel %vm45, %v19, 0.0
  %v47 = vadd.f32 %v40, %v46
  %v48 = vsub.f32 %v22, %v26
  %v49 = vmul.f32 %v48, 1.442695
  %v50 = vpow.pop %v49
  %v51 = vadd.f32 %v44, %v50
  %vm52 = vcmp.eq.s32.totalorder %v13, 3
  %v53 = vsel %vm52, %v22, 0.0
  %v54 = vadd.f32 %v47, %v53
  %v55 = vsub.f32 %v25, %v26
  %v56 = vmul.f32 %v55, 1.442695
  %v57 = vpow.pop %v56
  %v58 = vadd.f32 %v51, %v57
  %vm59 = vcmp.eq.s32.totalorder %v13, 4
  %v60 = vsel %vm59, %v25, 0.0
  %v61 = vadd.f32 %v54, %v60
  %v62 = vlog2.pop %v58
  %v63 = vmul.f32 %v62, 0.6931472
  %v64 = vadd.f32 %v26, %v63
  %v65 = vsub.f32 %v64, %v61
  %v66 = vlaneseq
  %v67 = vshrl.u32 %v66, 7
  %v68 = vlaneseq
  %v69 = vand.u32 %v68, 127
  %v70 = vstv 0
  %v71 = vadd.s32 %v70, %v67
  %v72 = vmul.u32 %v71, 128
  %v73 = vadd.s32 %v72, %v69
  %vm74 = vcmp.lt.s32.totalorder %v73, 8
  %v75 = vsel %vm74, %v65, 0.0
  %vm76 = vcmask 1040384
  %v77 = vsel %vm76, %v75, 0.0
  %78 = vadd.xlane.f32.xlu0 %v77
  %v79 = vpop.xlane.xlu0 %78
  %v80 = vrot.slane %v79, 4
  %v81 = vadd.f32 %v79, %v80
  %v82 = vrot.slane %v81, 2
  %v83 = vadd.f32 %v81, %v82
  %v84 = vrot.slane %v83, 1
  %v85 = vadd.f32 %v83, %v84
  %s86 = vtos %v85
  %v87 = vstv %s86
  %88 = vst [vmem:[%s2] sm:$0xff] %v87
  // Predicated region
  $region10: #{_background_class_loss_impl.1} parent=0 // pred_check
    _
  $region11: #{_background_class_loss_impl.1} parent=0 // pred_check_branch
    %90 = sbr.rel (0) target = $region13
  $region12: #{_background_class_loss_impl.1} parent=0 // pred_region
    _
  $region13: #{_background_class_loss_impl.1} parent=0 // pred_fallthru
    _
  // Predicated region
  $region14: #{_background_class_loss_impl.1} parent=0 // pred_check
    _
  $region15: #{_background_class_loss_impl.1} parent=0 // pred_check_branch
    %92 = sbr.rel (0) target = $region17
  $region16: #{_background_class_loss_impl.1} parent=0 // pred_region
    _
  $region17: #{_background_class_loss_impl.1} parent=0 // pred_fallthru
    _

</llo_original>
